<compile_context>
chip_gen: v6e
topology: v6e:2x2x1
jax: 0.10.0
libtpu: 0.0.40
codegen_flags: <defaults>
</compile_context>

<pallas_src>
import jax
import jax.numpy as jnp
from jax.experimental import pallas as pl
from jax.experimental.pallas import tpu as pltpu


def _linear_kernel(w_ref, b_ref, x_ref, o_ref):
    # w_ref: SMEM (1, 1) weight; b_ref: SMEM (1,) bias.
    # x_ref / o_ref: VMEM (tm, lanes) lane-dense tiles.
    o_ref[...] = x_ref[...] * w_ref[0, 0] + b_ref[0]


def _vmem_capacity_bytes():
    # Generation-aware VMEM budget; fall back to the smallest current value
    # (v7x, 64 MiB physical per TensorCore) if the query is unavailable.
    try:
        return int(pltpu.get_tpu_info().vmem_capacity_bytes)
    except Exception:
        return 64 * 1024 * 1024


@jax.jit
def my_linear_nn(x, weight, bias):
    """Forward of MyLinearNN: x (B, 1) float32 -> (B, 1) float32."""
    B, F = x.shape
    assert F == 1, "nn.Linear(1, 1): in_features must be 1"
    n = B
    dtype = x.dtype
    elt = jnp.dtype(dtype).itemsize

    # ---- lane-dense 2-D slab layout ---------------------------------------
    # Last dim: smallest multiple of 128 covering n, capped at 1024 so every
    # tile row is a contiguous 4 KiB DMA burst.
    lanes = min(((n + 127) // 128) * 128, 1024)
    rows = pl.cdiv(n, lanes)
    n_padded = rows * lanes

    # ---- generation-aware row-tile size ------------------------------------
    vmem_cap = _vmem_capacity_bytes()
    # Keep double-buffered (input + output) tiles within 1/4 of physical VMEM:
    # 2 buffers * 2 arrays * tm * lanes * elt <= vmem_cap // 4.
    tm_budget = max(8, ((vmem_cap // 4) // (2 * 2 * lanes * elt)) // 8 * 8)
    tm_max = min(1024, tm_budget)      # 1024x1024 f32 tile = 4 MiB
    if rows <= 8:
        tm = rows                       # one (possibly <8-row) full block
    else:
        # >=2 grid steps so the "parallel" axis can shard across v7x's 2 TCs.
        tm = min(tm_max, ((pl.cdiv(rows, 2) + 7) // 8) * 8)
    grid = (pl.cdiv(rows, tm),)

    # ---- build the (rows, lanes) view with no extra HBM passes when possible
    if n_padded == n:
        x2d = x.reshape(rows, lanes)    # contiguous reshape: no copy
    else:
        x2d = jnp.pad(jnp.ravel(x), (0, n_padded - n)).reshape(rows, lanes)

    cost = pl.CostEstimate(
        flops=2 * n_padded,
        transcendentals=0,
        bytes_accessed=2 * n_padded * elt,
    )

    out2d = pl.pallas_call(
        _linear_kernel,
        out_shape=jax.ShapeDtypeStruct((rows, lanes), dtype),
        grid=grid,
        in_specs=[
            pl.BlockSpec(memory_space=pltpu.SMEM),          # weight (1, 1)
            pl.BlockSpec(memory_space=pltpu.SMEM),          # bias   (1,)
            pl.BlockSpec((tm, lanes), lambda i: (i, 0)),    # x tile
        ],
        out_specs=pl.BlockSpec((tm, lanes), lambda i: (i, 0)),
        compiler_params=pltpu.CompilerParams(
            # TODO(synk): evaluate pltpu.CORE_PARALLEL here once verified on v7x.
            dimension_semantics=("parallel",),
            vmem_limit_bytes=min(64 * 1024 * 1024, vmem_cap // 2),
        ),
        cost_estimate=cost,
    )(weight, bias, x2d)

    if n_padded == n:
        return out2d.reshape(B, 1)
    return out2d.reshape(-1)[:n].reshape(B, 1)


if __name__ == "__main__":
    key = jax.random.PRNGKey(0)
    kx, kw, kb = jax.random.split(key, 3)

    B = 8
    x = jax.random.normal(kx, (B, 1), dtype=jnp.float32)

    # Deterministic parameter init (PyTorch Linear(1,1) uses U(-1, 1)).
    weight = jax.random.uniform(kw, (1, 1), dtype=jnp.float32, minval=-1.0, maxval=1.0)
    bias = jax.random.uniform(kb, (1,), dtype=jnp.float32, minval=-1.0, maxval=1.0)

    out = jax.block_until_ready(my_linear_nn(x, weight, bias))
    ref = x @ weight.T + bias
    assert out.shape == (B, 1)
    assert jnp.allclose(out, ref, atol=1e-6), "mismatch vs reference (B=8)"

    # Exercise the padded, multi-tile, and ragged-last-block paths too.
    for B2 in (2000, 20000):
        x2 = jax.random.normal(kx, (B2, 1), dtype=jnp.float32)
        out2 = jax.block_until_ready(my_linear_nn(x2, weight, bias))
        ref2 = x2 @ weight.T + bias
        assert out2.shape == (B2, 1)
        assert jnp.allclose(out2, ref2, atol=1e-6), f"mismatch vs reference (B={B2})"

    print("KERNEL_OK")
</pallas_src>

<mosaic_0001>
module attributes {stable_mosaic.version = 11 : i64} {
  func.func @_linear_kernel(%arg0: i32, %arg1: memref<1x1xf32, #tpu.memory_space<smem>>, %arg2: memref<1xf32, #tpu.memory_space<smem>>, %arg3: memref<1x128xf32, #tpu.memory_space<vmem>>, %arg4: memref<1x128xf32, #tpu.memory_space<vmem>>) attributes {dimension_semantics = [#tpu.dimension_semantics<parallel>], iteration_bounds = array<i64: 1>, scalar_prefetch = 0 : i64, scratch_operands = 0 : i64, tpu.core_type = #tpu.core_type<tc>, window_params = [{transform_indices = @transform_0, window_bounds = array<i64: 1, 1>}, {transform_indices = @transform_1, window_bounds = array<i64: 1>}, {transform_indices = @transform_2, window_bounds = array<i64: 1, 128>}, {transform_indices = @transform_3, window_bounds = array<i64: 1, 128>}]} {
    %c0 = arith.constant 0 : index
    %c0_0 = arith.constant 0 : index
    %0 = vector.load %arg3[%c0, %c0_0] : memref<1x128xf32, #tpu.memory_space<vmem>>, vector<1x128xf32>
    %c0_1 = arith.constant 0 : index
    %c0_2 = arith.constant 0 : index
    %1 = memref.load %arg1[%c0_1, %c0_2] : memref<1x1xf32, #tpu.memory_space<smem>>
    %2 = vector.broadcast %1 : f32 to vector<1x128xf32>
    %3 = arith.mulf %0, %2 : vector<1x128xf32>
    %c0_3 = arith.constant 0 : index
    %4 = memref.load %arg2[%c0_3] : memref<1xf32, #tpu.memory_space<smem>>
    %5 = vector.broadcast %4 : f32 to vector<1x128xf32>
    %6 = arith.addf %3, %5 : vector<1x128xf32>
    %c0_4 = arith.constant 0 : index
    %c0_5 = arith.constant 0 : index
    %7 = vector.load %arg4[%c0_4, %c0_5] : memref<1x128xf32, #tpu.memory_space<vmem>>, vector<1x128xf32>
    tpu.vector_store %arg4[%c0_4, %c0_5], %6 {strides = array<i32>} : memref<1x128xf32, #tpu.memory_space<vmem>>, vector<1x128xf32>,
    return
  }
  func.func @transform_0(%arg0: i32) -> (i32, i32) {
    %c0_i32 = arith.constant 0 : i32
    %c0_i32_0 = arith.constant 0 : i32
    %c0_i32_1 = arith.constant 0 : i32
    return %c0_i32, %c0_i32_0 : i32, i32
  }
  func.func @transform_1(%arg0: i32) -> i32 {
    %c0_i32 = arith.constant 0 : i32
    %c0_i32_0 = arith.constant 0 : i32
    return %c0_i32 : i32
  }
  func.func @transform_2(%arg0: i32) -> (i32, i32) {
    %c0_i32 = arith.constant 0 : i32
    %c0_i32_0 = arith.constant 0 : i32
    return %arg0, %c0_i32 : i32, i32
  }
  func.func @transform_3(%arg0: i32) -> (i32, i32) {
    %c0_i32 = arith.constant 0 : i32
    %c0_i32_0 = arith.constant 0 : i32
    return %arg0, %c0_i32 : i32, i32
  }
}

</mosaic_0001>

<llo_original>
// kernel: my_linear_nn.1
$region0: #{my_linear_nn.1}
  #allocation0 [shape = 'u32[]', space=smem, size = 0x4, offset = 0x4, fixed_abs, tag = 'smem constant byte address 0x4 - core index']
  #allocation1 [shape = 'u32[144,128]{1,0:T(1,128)}', space=vmem, size = 0x12000, scoped, tag = 'internal scratch']
  #allocation2 [shape = 'f32[1,1]{1,0:T(1,128)S(6)}', space=smem, size = 0x200, scoped, tag = 'scoped memory for my_linear_nn.1']
  #allocation3 [shape = 'f32[1]{0:T(128)S(6)}', space=smem, size = 0x200, scoped, tag = 'scoped memory for my_linear_nn.1']
  %s0 = inlined_call_operand.<no memory space> [shape: f32[1,1], index: 0, kind: input, shape index: {}]
  %s1 = inlined_call_operand.<no memory space> [shape: f32[1], index: 1, kind: input, shape index: {}]
  %s2 = inlined_call_operand.vmem [shape: f32[1,128], index: 2, kind: input, shape index: {}]
  %s3 = inlined_call_operand.vmem [shape: f32[1,128], index: 3, kind: output, shape index: {}]
  %s4 = sld [smem:[#allocation0]]
  $region22: #{my_linear_nn.1} parent=0
    _
  %s6 = ssub.s32 1, %s4
  %s7 = scalar_select 0, %s6, %s4
  %8 = sst [smem:[#allocation2]] %s0
  %9 = sst [smem:[#allocation3]] %s1
  // Predicated region
  $region2: #{my_linear_nn.1} parent=0 // pred_check
    _
  $region3: #{my_linear_nn.1} parent=0 // pred_check_branch
    %11 = sbr.rel (0) target = $region5
  $region4: #{my_linear_nn.1} parent=0 // pred_region
    _
  $region5: #{my_linear_nn.1} parent=0 // pred_fallthru
    _
  // Predicated region
  $region6: #{my_linear_nn.1} parent=0 // pred_check
    _
  $region7: #{my_linear_nn.1} parent=0 // pred_check_branch
    %13 = sbr.rel (0) target = $region9
  $region8: #{my_linear_nn.1} parent=0 // pred_region
    _
  $region9: #{my_linear_nn.1} parent=0 // pred_fallthru
    _
  // Predicated region
  $region10: #{my_linear_nn.1} parent=0 // pred_check
    _
  $region11: #{my_linear_nn.1} parent=0 // pred_check_branch
    %15 = sbr.rel (0) target = $region13
  $region12: #{my_linear_nn.1} parent=0 // pred_region
    _
  $region13: #{my_linear_nn.1} parent=0 // pred_fallthru
    _
  %v16 = vld [vmem:[%s2] sm:$0x1]
  %s17 = sld [smem:[#allocation2]]
  %v18 = vstv %s17
  %v19 = vmul.f32 %v16, %v18
  %s20 = sld [smem:[#allocation3]]
  %v21 = vstv %s20
  %v22 = vadd.f32 %v19, %v21
  %23 = vst [vmem:[%s3] sm:$0x1] %v22
  // Predicated region
  $region14: #{my_linear_nn.1} parent=0 // pred_check
    _
  $region15: #{my_linear_nn.1} parent=0 // pred_check_branch
    %25 = sbr.rel (0) target = $region17
  $region16: #{my_linear_nn.1} parent=0 // pred_region
    _
  $region17: #{my_linear_nn.1} parent=0 // pred_fallthru
    _
  // Predicated region
  $region18: #{my_linear_nn.1} parent=0 // pred_check
    _
  $region19: #{my_linear_nn.1} parent=0 // pred_check_branch
    %27 = sbr.rel (0) target = $region21
  $region20: #{my_linear_nn.1} parent=0 // pred_region
    _
  $region21: #{my_linear_nn.1} parent=0 // pred_fallthru
    _

</llo_original>
